<compile_context>
chip_gen: v7x
topology: tpu7x:2x2x1
jax: 0.10.0
libtpu: 0.0.40
codegen_flags: <defaults>
</compile_context>

<pallas_src>
import functools
import math

import jax
import jax.numpy as jnp
from jax.experimental import pallas as pl
from jax.experimental.pallas import tpu as pltpu


# ----------------------------- configuration / tiling helpers -----------------------


def _round_up(x, m):
    return (x + m - 1) // m * m


@functools.lru_cache(maxsize=None)
def _tpu_config():
    """(vmem_limit_bytes, max_tile_m, max_tile_n) per TPU generation.

    v5e/v6e: 128 MiB physical VMEM -> bigger tiles + 64 MiB scoped limit.
    v7x:     64 MiB per TensorCore -> keep 256x512 tiles + 32 MiB limit.
    Unknown / query failure -> conservative (v7x-safe) setting.
    """
    vmem_cap = 0
    try:
        vmem_cap = int(pltpu.get_tpu_info().vmem_capacity_bytes)
    except Exception:
        vmem_cap = 0
    if vmem_cap >= 96 * 1024 * 1024:
        return (64 * 1024 * 1024, 512, 512)
    return (32 * 1024 * 1024, 256, 512)


def _cparams(semantics, vmem_limit):
    return pltpu.CompilerParams(dimension_semantics=semantics,
                                vmem_limit_bytes=vmem_limit)


def _pick_tile_m(M, max_tile):
    """Row tile: multiple of 8 that divides M (M is always a multiple of 8 here)."""
    start = min(max_tile, M)
    start -= start % 8
    for t in range(start, 7, -8):
        if M % t == 0:
            return t
    return 8


def _pick_tile_n(N, max_tile):
    """Lane tile: full N if small, else the largest multiple of 128 <= max_tile dividing N."""
    if N <= max_tile:
        return N
    for t in range(max_tile - max_tile % 128, 127, -128):
        if N % t == 0:
            return t
    return N


def _pad_vocab(v):
    return _round_up(v, 128) if v <= 512 else _round_up(v, 512)


def _activate(y, activation):
    if activation == "gelu":
        # tanh-approximation GELU (matches the GELU module used in BERT-pytorch)
        return 0.5 * y * (1.0 + jnp.tanh(0.7978845608028654 * (y + 0.044715 * y * y * y)))
    if activation == "log_softmax":
        z = y - jnp.max(y, axis=-1, keepdims=True)
        return z - jnp.log(jnp.sum(jnp.exp(z), axis=-1, keepdims=True))
    return y


# ----------------------------- Pallas kernels ----------------------------------------


def _layernorm_kernel(x_ref, g_ref, b_ref, o_ref, *, eps):
    x = x_ref[...]
    mu = jnp.mean(x, axis=-1, keepdims=True)
    var = jnp.mean((x - mu) ** 2, axis=-1, keepdims=True)
    y = (x - mu) * jax.lax.rsqrt(var + eps)
    o_ref[...] = (y * g_ref[...] + b_ref[...]).astype(o_ref.dtype)


def _ln_matmul_kernel(x_ref, g_ref, be_ref, w_ref, b_ref, o_ref, xn_ref, *, eps, activation):
    # LayerNorm computed once per row tile (first N tile) into bf16 VMEM scratch,
    # reused for every N tile of the same row tile.
    @pl.when(pl.program_id(1) == 0)
    def _():
        x = x_ref[...]
        mu = jnp.mean(x, axis=-1, keepdims=True)
        var = jnp.mean((x - mu) ** 2, axis=-1, keepdims=True)
        xn = (x - mu) * jax.lax.rsqrt(var + eps)
        xn_ref[...] = (xn * g_ref[...] + be_ref[...]).astype(xn_ref.dtype)
    y = jnp.dot(xn_ref[...], w_ref[...], preferred_element_type=jnp.float32) + b_ref[...]
    o_ref[...] = _activate(y, activation).astype(o_ref.dtype)


def _ln_matmul_qkv_kernel(x_ref, g_ref, be_ref, w_ref, b_ref, o_ref, xn_ref, *, eps):
    # Same LN-once-per-row-tile trick; emits one head's [q|k|v] block (head-major output).
    @pl.when(pl.program_id(1) == 0)
    def _():
        x = x_ref[...]
        mu = jnp.mean(x, axis=-1, keepdims=True)
        var = jnp.mean((x - mu) ** 2, axis=-1, keepdims=True)
        xn = (x - mu) * jax.lax.rsqrt(var + eps)
        xn_ref[...] = (xn * g_ref[...] + be_ref[...]).astype(xn_ref.dtype)
    y = jnp.dot(xn_ref[...], w_ref[0], preferred_element_type=jnp.float32) + b_ref[0]
    o_ref[0] = y.astype(o_ref.dtype)


def _matmul_kernel(x_ref, w_ref, b_ref, o_ref, *, activation):
    x = x_ref[...].astype(jnp.bfloat16)
    y = jnp.dot(x, w_ref[...], preferred_element_type=jnp.float32) + b_ref[...]
    o_ref[...] = _activate(y, activation).astype(o_ref.dtype)


def _matmul_res_kernel(x_ref, w_ref, b_ref, r_ref, o_ref, *, activation):
    x = x_ref[...].astype(jnp.bfloat16)
    y = jnp.dot(x, w_ref[...], preferred_element_type=jnp.float32) + b_ref[...]
    o_ref[...] = (_activate(y, activation) + r_ref[...]).astype(o_ref.dtype)


def _attn_kernel(qkv_ref, mask_ref, o_ref, *, head_dim, scale):
    qkv = qkv_ref[0, 0]                     # (S, 3*Dh) bf16, one (batch, head) block
    madd = mask_ref[0]                      # (1, S) additive key mask (0 / -1e9)
    q = qkv[:, :head_dim]
    k = qkv[:, head_dim:2 * head_dim]
    v = qkv[:, 2 * head_dim:]
    # contract last dims directly: no explicit .T -> no XLU transpose competing with the MXU
    s = jax.lax.dot_general(q, k, (((1,), (1,)), ((), ())),
                            preferred_element_type=jnp.float32)
    s = s * scale + madd
    s = s - jnp.max(s, axis=-1, keepdims=True)
    p = jnp.exp(s)
    p = p * pl.reciprocal(jnp.sum(p, axis=-1, keepdims=True), approx=True)
    o_ref[0, 0] = jnp.dot(p.astype(jnp.bfloat16), v,
                          preferred_element_type=jnp.float32).astype(o_ref.dtype)


def _headmajor_proj_kernel(x_ref, w_ref, b_ref, r_ref, o_ref, *, n_heads):
    # out = sum_h ctx[h] @ wo[h] + bias + residual   (ctx / wo are head-major)
    acc = jnp.zeros(o_ref.shape, jnp.float32) + b_ref[...]
    for h in range(n_heads):
        acc = acc + jnp.dot(x_ref[h], w_ref[h], preferred_element_type=jnp.float32)
    o_ref[...] = (acc + r_ref[...]).astype(o_ref.dtype)


def _head_lse_kernel(x_ref, w_ref, b_ref, logit_ref, lse_ref, m_ref, l_ref):
    # Tiled vocab matmul writing bf16 logits while keeping an online logsumexp
    # (running row max / sum-exp) in VMEM scratch across the vocab ("arbitrary") axis.
    @pl.when(pl.program_id(1) == 0)
    def _():
        m_ref[...] = jnp.full(m_ref.shape, -jnp.inf, m_ref.dtype)
        l_ref[...] = jnp.zeros(l_ref.shape, l_ref.dtype)
    x = x_ref[...].astype(jnp.bfloat16)
    y = jnp.dot(x, w_ref[...], preferred_element_type=jnp.float32) + b_ref[...]
    logit_ref[...] = y.astype(logit_ref.dtype)
    m_new = jnp.maximum(m_ref[...], jnp.max(y, axis=-1, keepdims=True))
    l_new = (l_ref[...] * jnp.exp(m_ref[...] - m_new)
             + jnp.sum(jnp.exp(y - m_new), axis=-1, keepdims=True))
    m_ref[...] = m_new
    l_ref[...] = l_new
    lse_ref[...] = m_new + jnp.log(l_new)   # final vocab tile leaves the true logsumexp


def _sub_lse_kernel(logit_ref, lse_ref, o_ref):
    o_ref[...] = (logit_ref[...].astype(jnp.float32) - lse_ref[...]).astype(o_ref.dtype)


# ----------------------------- pallas_call wrappers ----------------------------------


def layernorm(x, gamma, beta, eps=1e-5):
    vmem, mtm, _ = _tpu_config()
    M, H = x.shape
    tm = _pick_tile_m(M, mtm)
    return pl.pallas_call(
        functools.partial(_layernorm_kernel, eps=eps),
        out_shape=jax.ShapeDtypeStruct((M, H), jnp.float32),
        grid=(M // tm,),
        in_specs=[pl.BlockSpec((tm, H), lambda i: (i, 0)),
                  pl.BlockSpec((1, H), lambda i: (0, 0)),
                  pl.BlockSpec((1, H), lambda i: (0, 0))],
        out_specs=pl.BlockSpec((tm, H), lambda i: (i, 0)),
        compiler_params=_cparams(("parallel",), vmem),
    )(x, gamma.reshape(1, H).astype(jnp.float32), beta.reshape(1, H).astype(jnp.float32))


def ln_dense(x, gamma, beta, w, b, activation=None, out_dtype=jnp.bfloat16, eps=1e-5):
    """Fused LayerNorm(x) @ w + b (+ activation).  x f32, w bf16, out bf16 by default."""
    vmem, mtm, mtn = _tpu_config()
    M, K = x.shape
    N = w.shape[1]
    tm = _pick_tile_m(M, mtm)
    tn = _pick_tile_n(N, mtn)
    kern = functools.partial(_ln_matmul_kernel, eps=eps, activation=activation)
    return pl.pallas_call(
        kern,
        out_shape=jax.ShapeDtypeStruct((M, N), out_dtype),
        grid=(M // tm, N // tn),
        in_specs=[pl.BlockSpec((tm, K), lambda i, j: (i, 0)),
                  pl.BlockSpec((1, K), lambda i, j: (0, 0)),
                  pl.BlockSpec((1, K), lambda i, j: (0, 0)),
                  pl.BlockSpec((K, tn), lambda i, j: (0, j)),
                  pl.BlockSpec((1, tn), lambda i, j: (0, j))],
        out_specs=pl.BlockSpec((tm, tn), lambda i, j: (i, j)),
        scratch_shapes=[pltpu.VMEM((tm, K), jnp.bfloat16)],
        compiler_params=_cparams(("parallel", "arbitrary"), vmem),
    )(x, gamma.reshape(1, K).astype(jnp.float32),
      beta.reshape(1, K).astype(jnp.float32), w, b.reshape(1, N).astype(jnp.float32))


def ln_dense_qkv(x, gamma, beta, wqkv, bqkv, eps=1e-5):
    """Fused LayerNorm + QKV projection emitted head-major:
    x (M, H) f32 -> (n_heads, M, 3*Dh) bf16 with per-head [q|k|v] lanes."""
    vmem, mtm, _ = _tpu_config()
    M, K = x.shape
    n_heads, _, d3 = wqkv.shape
    tm = _pick_tile_m(M, mtm)
    kern = functools.partial(_ln_matmul_qkv_kernel, eps=eps)
    return pl.pallas_call(
        kern,
        out_shape=jax.ShapeDtypeStruct((n_heads, M, d3), jnp.bfloat16),
        grid=(M // tm, n_heads),
        in_specs=[pl.BlockSpec((tm, K), lambda i, h: (i, 0)),
                  pl.BlockSpec((1, K), lambda i, h: (0, 0)),
                  pl.BlockSpec((1, K), lambda i, h: (0, 0)),
                  pl.BlockSpec((1, K, d3), lambda i, h: (h, 0, 0)),
                  pl.BlockSpec((1, 1, d3), lambda i, h: (h, 0, 0))],
        out_specs=pl.BlockSpec((1, tm, d3), lambda i, h: (h, i, 0)),
        scratch_shapes=[pltpu.VMEM((tm, K), jnp.bfloat16)],
        compiler_params=_cparams(("parallel", "arbitrary"), vmem),
    )(x, gamma.reshape(1, K).astype(jnp.float32),
      beta.reshape(1, K).astype(jnp.float32), wqkv, bqkv)


def attention(qkv_hm, key_mask_add, batch, seq, n_heads, head_dim):
    """qkv_hm (heads, B*S, 3*Dh) bf16, mask (B, 1, S) -> context (heads, B*S, Dh) bf16."""
    vmem, _, _ = _tpu_config()
    d3 = 3 * head_dim
    qkv4 = qkv_hm.reshape(n_heads, batch, seq, d3)          # free reshape
    kern = functools.partial(_attn_kernel, head_dim=head_dim,
                             scale=1.0 / math.sqrt(head_dim))
    out = pl.pallas_call(
        kern,
        out_shape=jax.ShapeDtypeStruct((n_heads, batch, seq, head_dim), jnp.bfloat16),
        grid=(batch, n_heads),          # >= 2 parallel grid points feeds both v7x cores
        in_specs=[pl.BlockSpec((1, 1, seq, d3), lambda b, h: (h, b, 0, 0)),
                  pl.BlockSpec((1, 1, seq), lambda b, h: (b, 0, 0))],
        out_specs=pl.BlockSpec((1, 1, seq, head_dim), lambda b, h: (h, b, 0, 0)),
        compiler_params=_cparams(("parallel", "parallel"), vmem),
    )(qkv4, key_mask_add)
    return out.reshape(n_heads, batch * seq, head_dim)


def attn_out_proj(ctx_hm, wo_hm, bo, residual):
    """Output projection on head-major context + fused residual add -> (M, H) f32."""
    vmem, mtm, mtn = _tpu_config()
    n_heads, M, dh = ctx_hm.shape
    H = wo_hm.shape[2]
    tm = _pick_tile_m(M, mtm)
    tn = _pick_tile_n(H, mtn)
    kern = functools.partial(_headmajor_proj_kernel, n_heads=n_heads)
    return pl.pallas_call(
        kern,
        out_shape=jax.ShapeDtypeStruct((M, H), jnp.float32),
        grid=(M // tm, H // tn),
        in_specs=[pl.BlockSpec((n_heads, tm, dh), lambda i, j: (0, i, 0)),
                  pl.BlockSpec((n_heads, dh, tn), lambda i, j: (0, 0, j)),
                  pl.BlockSpec((1, tn), lambda i, j: (0, j)),
                  pl.BlockSpec((tm, tn), lambda i, j: (i, j))],
        out_specs=pl.BlockSpec((tm, tn), lambda i, j: (i, j)),
        compiler_params=_cparams(("parallel", "parallel"), vmem),
    )(ctx_hm, wo_hm, bo.reshape(1, H).astype(jnp.float32), residual)


def dense(x, w, b, residual=None, activation=None, out_dtype=jnp.float32):
    """y = act(x @ w + b) [+ residual].  x f32/bf16, w bf16."""
    vmem, mtm, mtn = _tpu_config()
    M, K = x.shape
    N = w.shape[1]
    tm = _pick_tile_m(M, mtm)
    tn = _pick_tile_n(N, mtn)
    if activation == "log_softmax":
        assert tn == N, "fused log_softmax needs the full row in one lane tile"
    b2 = b.reshape(1, N).astype(jnp.float32)
    if residual is None:
        kern = functools.partial(_matmul_kernel, activation=activation)
        in_specs = [pl.BlockSpec((tm, K), lambda i, j: (i, 0)),
                    pl.BlockSpec((K, tn), lambda i, j: (0, j)),
                    pl.BlockSpec((1, tn), lambda i, j: (0, j))]
        args = (x, w, b2)
    else:
        kern = functools.partial(_matmul_res_kernel, activation=activation)
        in_specs = [pl.BlockSpec((tm, K), lambda i, j: (i, 0)),
                    pl.BlockSpec((K, tn), lambda i, j: (0, j)),
                    pl.BlockSpec((1, tn), lambda i, j: (0, j)),
                    pl.BlockSpec((tm, tn), lambda i, j: (i, j))]
        args = (x, w, b2, residual)
    return pl.pallas_call(
        kern,
        out_shape=jax.ShapeDtypeStruct((M, N), out_dtype),
        grid=(M // tm, N // tn),
        in_specs=in_specs,
        out_specs=pl.BlockSpec((tm, tn), lambda i, j: (i, j)),
        compiler_params=_cparams(("parallel", "parallel"), vmem),
    )(*args)


def masked_chem_head(h, w, b):
    """Linear(hidden -> padded vocab) + LogSoftmax.
    Small vocab: fully fused.  Large vocab: tiled matmul with online logsumexp in VMEM scratch
    + bf16 logits, then a cheap tiled subtraction (no full f32 logits HBM round trip)."""
    vmem, mtm, mtn = _tpu_config()
    M, K = h.shape
    Vp = w.shape[1]
    if Vp <= mtn:
        return dense(h, w, b, activation="log_softmax", out_dtype=jnp.float32)
    tm = _pick_tile_m(M, mtm)
    tn = _pick_tile_n(Vp, mtn)
    logits, lse = pl.pallas_call(
        _head_lse_kernel,
        out_shape=(jax.ShapeDtypeStruct((M, Vp), jnp.bfloat16),
                   jax.ShapeDtypeStruct((M, 1), jnp.float32)),
        grid=(M // tm, Vp // tn),
        in_specs=[pl.BlockSpec((tm, K), lambda i, j: (i, 0)),
                  pl.BlockSpec((K, tn), lambda i, j: (0, j)),
                  pl.BlockSpec((1, tn), lambda i, j: (0, j))],
        out_specs=(pl.BlockSpec((tm, tn), lambda i, j: (i, j)),
                   pl.BlockSpec((tm, 1), lambda i, j: (i, 0))),
        scratch_shapes=[pltpu.VMEM((tm, 1), jnp.float32),
                        pltpu.VMEM((tm, 1), jnp.float32)],
        compiler_params=_cparams(("parallel", "arbitrary"), vmem),
    )(h, w, b.reshape(1, Vp).astype(jnp.float32))
    return pl.pallas_call(
        _sub_lse_kernel,
        out_shape=jax.ShapeDtypeStruct((M, Vp), jnp.float32),
        grid=(M // tm, Vp // tn),
        in_specs=[pl.BlockSpec((tm, tn), lambda i, j: (i, j)),
                  pl.BlockSpec((tm, 1), lambda i, j: (i, 0))],
        out_specs=pl.BlockSpec((tm, tn), lambda i, j: (i, j)),
        compiler_params=_cparams(("parallel", "parallel"), vmem),
    )(logits, lse)


# ----------------------------- Parameters --------------------------------------------


def _dense_init(key, fan_in, fan_out):
    # weights in bf16 (MXU native path), biases in f32
    w = (jax.random.normal(key, (fan_in, fan_out), jnp.float32) * 0.02).astype(jnp.bfloat16)
    b = jnp.zeros((fan_out,), jnp.float32)
    return w, b


def sinusoidal_pos_emb(seq_len, hidden):
    pos = jnp.arange(seq_len, dtype=jnp.float32)[:, None]
    i = jnp.arange(0, hidden, 2, dtype=jnp.float32)[None, :]
    ang = pos / jnp.power(10000.0, i / hidden)
    pe = jnp.zeros((seq_len, hidden), jnp.float32)
    pe = pe.at[:, 0::2].set(jnp.sin(ang))
    pe = pe.at[:, 1::2].set(jnp.cos(ang))
    return pe


def init_params(key, vocab_size, hidden, n_layers, attn_heads, seq_len):
    ff = 4 * hidden
    dh = hidden // attn_heads
    seq_pad = _round_up(seq_len, 8)
    k_tok, k_head, k_layers = jax.random.split(key, 3)

    tok = jax.random.normal(k_tok, (vocab_size, hidden), jnp.float32) * 0.02
    tok = tok.at[0].set(0.0)  # nn.Embedding(padding_idx=0)

    params = {
        "vocab_size": vocab_size,
        "tok_emb": tok,
        "pos_emb": sinusoidal_pos_emb(seq_pad, hidden),
        "emb_ln_g": jnp.ones((hidden,), jnp.float32),
        "emb_ln_b": jnp.zeros((hidden,), jnp.float32),
        "layers": [],
    }

    def _headmajor_cols(w):   # (H, H) -> (heads, H, Dh): head h gets its Dh column slice
        return jnp.transpose(w.reshape(hidden, attn_heads, dh), (1, 0, 2))

    for lk in jax.random.split(k_layers, n_layers):
        kq, kk, kv, ko, k1, k2 = jax.random.split(lk, 6)
        wq, bq = _dense_init(kq, hidden, hidden)
        wk, bk = _dense_init(kk, hidden, hidden)
        wv, bv = _dense_init(kv, hidden, hidden)
        wo, bo = _dense_init(ko, hidden, hidden)
        w1, b1 = _dense_init(k1, hidden, ff)
        w2, b2 = _dense_init(k2, ff, hidden)

        wqkv = jnp.concatenate([_headmajor_cols(wq), _headmajor_cols(wk),
                                _headmajor_cols(wv)], axis=2)         # (heads, H, 3*Dh)
        bqkv = jnp.concatenate([bq.reshape(attn_heads, 1, dh),
                                bk.reshape(attn_heads, 1, dh),
                                bv.reshape(attn_heads, 1, dh)], axis=2).astype(jnp.float32)

        params["layers"].append({
            "ln1_g": jnp.ones((hidden,), jnp.float32),
            "ln1_b": jnp.zeros((hidden,), jnp.float32),
            "wqkv": wqkv,                                   # per-head [q|k|v] columns
            "bqkv": bqkv,                                   # (heads, 1, 3*Dh) f32
            "wo": wo.reshape(attn_heads, dh, hidden),       # head-major rows
            "bo": bo,
            "ln2_g": jnp.ones((hidden,), jnp.float32),
            "ln2_b": jnp.zeros((hidden,), jnp.float32),
            "w1": w1, "b1": b1, "w2": w2, "b2": b2,
        })

    wm, bm = _dense_init(k_head, hidden, vocab_size)
    vp = _pad_vocab(vocab_size)
    if vp != vocab_size:
        # lane-dense, VMEM-safe vocab tiles; padded columns get bias -1e9 so they
        # contribute ~0 to the softmax normalization and are sliced off at the end.
        wm = jnp.pad(wm, ((0, 0), (0, vp - vocab_size)))
        bm = jnp.concatenate([bm, jnp.full((vp - vocab_size,), -1e9, jnp.float32)])
    params["mask_w"] = wm
    params["mask_b"] = bm
    return params


# ----------------------------- Forward ------------------------------------------------


def bert_chem_mask_forward(params, x_tokens, attn_heads):
    B, S = x_tokens.shape
    H = params["tok_emb"].shape[1]
    dh = H // attn_heads
    V = params["vocab_size"]

    # Pad the sequence once (token id 0 == padding) so every row count is a multiple of 8
    # for the whole network -> no per-kernel pad/slice HBM copies.  Slice once at the end.
    Sp = _round_up(S, 8)
    x_pad = x_tokens if Sp == S else jnp.pad(x_tokens, ((0, 0), (0, Sp - S)))
    M = B * Sp

    # Embedding (gather is glue in plain JAX; LN runs in Pallas).
    # TODO(synk): dropout layers are identity (inference/eval semantics).
    tok = jnp.take(params["tok_emb"], x_pad, axis=0)                       # (B, Sp, H)
    h = (tok + params["pos_emb"][:Sp][None, :, :]).reshape(M, H).astype(jnp.float32)
    h = layernorm(h, params["emb_ln_g"], params["emb_ln_b"])

    # Padding mask: attend only to positions where token id > 0 (additive -1e9).
    key_mask_add = jnp.where(x_pad > 0, 0.0, -1e9).astype(jnp.float32)[:, None, :]  # (B,1,Sp)

    for layer in params["layers"]:
        # --- self-attention sublayer (pre-LN, residual); LN + QKV fused, head-major ---
        qkv = ln_dense_qkv(h, layer["ln1_g"], layer["ln1_b"],
                           layer["wqkv"], layer["bqkv"])                   # (heads, M, 3Dh) bf16
        ctx = attention(qkv, key_mask_add, B, Sp, attn_heads, dh)          # (heads, M, Dh) bf16
        h = attn_out_proj(ctx, layer["wo"], layer["bo"], h)                # (M, H) f32

        # --- feed-forward sublayer (pre-LN, residual); LN + FFN1 + GELU fused, bf16 hidden ---
        f = ln_dense(h, layer["ln2_g"], layer["ln2_b"], layer["w1"], layer["b1"],
                     activation="gelu", out_dtype=jnp.bfloat16)            # (M, 4H) bf16
        h = dense(f, layer["w2"], layer["b2"], residual=h)                 # (M, H) f32

    # MaskedChem head: Linear(hidden -> vocab) + LogSoftmax(dim=-1).
    logp = masked_chem_head(h, params["mask_w"], params["mask_b"])         # (M, Vp) f32
    return logp.reshape(B, Sp, -1)[:, :S, :V]


# ----------------------------- Main ----------------------------------------------------

if __name__ == "__main__":
    VOCAB = 16
    HIDDEN = 32
    N_LAYERS = 2
    HEADS = 4
    SEQ = 8
    BATCH = 2

    root = jax.random.PRNGKey(0)
    k_params, k_data = jax.random.split(root)

    params = init_params(k_params, VOCAB, HIDDEN, N_LAYERS, HEADS, SEQ)
    # token ids in [0, VOCAB); 0 acts as padding
    x = jax.random.randint(k_data, (BATCH, SEQ), 0, VOCAB, dtype=jnp.int32)

    out = bert_chem_mask_forward(params, x, HEADS)
    out = jax.block_until_ready(out)

    assert out.shape == (BATCH, SEQ, VOCAB), out.shape
    assert bool(jnp.all(jnp.isfinite(out)))
    # log-softmax rows should sum to ~1 in prob space
    assert bool(jnp.allclose(jnp.sum(jnp.exp(out), axis=-1), 1.0, atol=1e-3))
    print("KERNEL_OK")
</pallas_src>

<mosaic_0001>
module attributes {stable_mosaic.version = 11 : i64} {
  func.func @_layernorm_kernel(%arg0: i32, %arg1: memref<16x32xf32, #tpu.memory_space<vmem>>, %arg2: memref<1x32xf32, #tpu.memory_space<vmem>>, %arg3: memref<1x32xf32, #tpu.memory_space<vmem>>, %arg4: memref<16x32xf32, #tpu.memory_space<vmem>>) attributes {dimension_semantics = [#tpu.dimension_semantics<parallel>], iteration_bounds = array<i64: 1>, scalar_prefetch = 0 : i64, scratch_operands = 0 : i64, tpu.core_type = #tpu.core_type<tc>, window_params = [{transform_indices = @transform_0, window_bounds = array<i64: 16, 32>}, {pipeline_mode = #tpu.pipeline_mode<synchronous>, transform_indices = @transform_1, window_bounds = array<i64: 1, 32>}, {pipeline_mode = #tpu.pipeline_mode<synchronous>, transform_indices = @transform_2, window_bounds = array<i64: 1, 32>}, {transform_indices = @transform_3, window_bounds = array<i64: 16, 32>}]} {
    %c0 = arith.constant 0 : index
    %c0_0 = arith.constant 0 : index
    %0 = vector.load %arg1[%c0, %c0_0] : memref<16x32xf32, #tpu.memory_space<vmem>>, vector<16x32xf32>
    %cst = arith.constant dense<0.000000e+00> : vector<16xf32>
    %1 = vector.multi_reduction <add>, %0, %cst [1] : vector<16x32xf32> to vector<16xf32>
    %2 = vector.shape_cast %1 : vector<16xf32> to vector<16x1xf32>
    %cst_1 = arith.constant 3.200000e+01 : f32
    %3 = vector.broadcast %cst_1 : f32 to vector<16x1xf32>
    %4 = arith.divf %2, %3 : vector<16x1xf32>
    %5 = vector.broadcast %4 : vector<16x1xf32> to vector<16x32xf32>
    %6 = arith.subf %0, %5 : vector<16x32xf32>
    %7 = arith.mulf %6, %6 : vector<16x32xf32>
    %cst_2 = arith.constant dense<0.000000e+00> : vector<16xf32>
    %8 = vector.multi_reduction <add>, %7, %cst_2 [1] : vector<16x32xf32> to vector<16xf32>
    %9 = vector.shape_cast %8 : vector<16xf32> to vector<16x1xf32>
    %cst_3 = arith.constant 3.200000e+01 : f32
    %10 = vector.broadcast %cst_3 : f32 to vector<16x1xf32>
    %11 = arith.divf %9, %10 : vector<16x1xf32>
    %12 = vector.broadcast %4 : vector<16x1xf32> to vector<16x32xf32>
    %13 = arith.subf %0, %12 : vector<16x32xf32>
    %cst_4 = arith.constant 9.99999974E-6 : f32
    %14 = vector.broadcast %cst_4 : f32 to vector<16x1xf32>
    %15 = arith.addf %11, %14 : vector<16x1xf32>
    %16 = math.rsqrt %15 : vector<16x1xf32>
    %17 = vector.broadcast %16 : vector<16x1xf32> to vector<16x32xf32>
    %18 = arith.mulf %13, %17 : vector<16x32xf32>
    %c0_5 = arith.constant 0 : index
    %c0_6 = arith.constant 0 : index
    %19 = vector.load %arg2[%c0_5, %c0_6] : memref<1x32xf32, #tpu.memory_space<vmem>>, vector<1x32xf32>
    %20 = vector.broadcast %19 : vector<1x32xf32> to vector<16x32xf32>
    %21 = arith.mulf %18, %20 : vector<16x32xf32>
    %c0_7 = arith.constant 0 : index
    %c0_8 = arith.constant 0 : index
    %22 = vector.load %arg3[%c0_7, %c0_8] : memref<1x32xf32, #tpu.memory_space<vmem>>, vector<1x32xf32>
    %23 = vector.broadcast %22 : vector<1x32xf32> to vector<16x32xf32>
    %24 = arith.addf %21, %23 : vector<16x32xf32>
    %c0_9 = arith.constant 0 : index
    %c0_10 = arith.constant 0 : index
    %25 = vector.load %arg4[%c0_9, %c0_10] : memref<16x32xf32, #tpu.memory_space<vmem>>, vector<16x32xf32>
    tpu.vector_store %arg4[%c0_9, %c0_10], %24 {strides = array<i32>} : memref<16x32xf32, #tpu.memory_space<vmem>>, vector<16x32xf32>,
    return
  }
  func.func @transform_0(%arg0: i32) -> (i32, i32) {
    %c0_i32 = arith.constant 0 : i32
    %c0_i32_0 = arith.constant 0 : i32
    return %arg0, %c0_i32 : i32, i32
  }
  func.func @transform_1(%arg0: i32) -> (i32, i32) {
    %c0_i32 = arith.constant 0 : i32
    %c0_i32_0 = arith.constant 0 : i32
    %c0_i32_1 = arith.constant 0 : i32
    return %c0_i32, %c0_i32_0 : i32, i32
  }
  func.func @transform_2(%arg0: i32) -> (i32, i32) {
    %c0_i32 = arith.constant 0 : i32
    %c0_i32_0 = arith.constant 0 : i32
    %c0_i32_1 = arith.constant 0 : i32
    return %c0_i32, %c0_i32_0 : i32, i32
  }
  func.func @transform_3(%arg0: i32) -> (i32, i32) {
    %c0_i32 = arith.constant 0 : i32
    %c0_i32_0 = arith.constant 0 : i32
    return %arg0, %c0_i32 : i32, i32
  }
}

</mosaic_0001>

<llo_original>
// kernel: tpu_custom_call.1
$region0: #{tpu_custom_call.1}
  #allocation0 [shape = 'u32[]', space=smem, size = 0x4, offset = 0x4, fixed_abs, tag = 'smem constant byte address 0x4 - core index']
  #allocation1 [shape = 'u32[144,128]{1,0:T(1,128)}', space=vmem, size = 0x12000, scoped, tag = 'internal scratch']
  %s0 = inlined_call_operand.hbm [shape: f32[16,32], index: 0, kind: input, shape index: {}]
  %s1 = inlined_call_operand.vmem [shape: f32[1,32], index: 1, kind: input, shape index: {}]
  %s2 = inlined_call_operand.vmem [shape: f32[1,32], index: 2, kind: input, shape index: {}]
  %s3 = inlined_call_operand.hbm [shape: f32[16,32], index: 3, kind: output, shape index: {}]
  %s4 = sld [smem:[#allocation0]]
  $region26: #{tpu_custom_call.1} parent=0
    _
  %s6 = ssub.s32 1, %s4
  %s7 = scalar_select 0, %s6, %s4
  $region1: #{tpu_custom_call.1} parent=0
    #allocation2 [shape = 'u8[8192]{0}', space=vmem, size = 0x2000, scoped, tag = 'input window, operand 0, single buffered']
    #allocation3 [shape = 's32[1]{0}', space=sflag, size = 0x4, scoped, tag = 'scoped memory for tpu_custom_call.1']
    #allocation4 [shape = 's32[1]{0}', space=sflag, size = 0x4, scoped, tag = 'scoped memory for tpu_custom_call.1']
    #allocation5 [shape = 'u8[8192]{0}', space=vmem, size = 0x2000, scoped, tag = 'output window, operand 0, single buffered']
    %8 = vsyncpa [#allocation3], 0
    %9 = vsyncpa [#allocation4], 0
    // Predicated region
    $region2: #{tpu_custom_call.1} parent=1 // pred_check
      _
    $region3: #{tpu_custom_call.1} parent=1 // pred_check_branch
      %11 = sbr.rel (0) target = $region5
    $region4: #{tpu_custom_call.1} parent=1 // pred_region
      %s13 = ssub.s32 256, 256
      %14 = vsyncadd [#allocation3], %s13
      %s15 = sshll.u32 [#allocation2], 4
      %s16 = int_to_ptr.vmem [resolvable:$true] %s15
      %21 = dma.hbm_to_vmem [thread:$0]  %s0, 256, %s16, [#allocation3], 128, 128, 8
    $region5: #{tpu_custom_call.1} parent=1 // pred_fallthru
      _
    // Predicated region
    $region6: #{tpu_custom_call.1} parent=1 // pred_check
      _
    $region7: #{tpu_custom_call.1} parent=1 // pred_check_branch
      %23 = sbr.rel (0) target = $region9
    $region8: #{tpu_custom_call.1} parent=1 // pred_region
      _
    $region9: #{tpu_custom_call.1} parent=1 // pred_fallthru
      _
    // Predicated region
    $region10: #{tpu_custom_call.1} parent=1 // pred_check
      _
    $region11: #{tpu_custom_call.1} parent=1 // pred_check_branch
      %25 = sbr.rel (0) target = $region13
    $region12: #{tpu_custom_call.1} parent=1 // pred_region
      _
    $region13: #{tpu_custom_call.1} parent=1 // pred_fallthru
      _
    // Predicated region
    $region14: #{tpu_custom_call.1} parent=1 // pred_check
      _
    $region15: #{tpu_custom_call.1} parent=1 // pred_check_branch
      %27 = sbr.rel (0) target = $region17
    $region16: #{tpu_custom_call.1} parent=1 // pred_region
      %28 = dma.done [#allocation3], 256
    $region17: #{tpu_custom_call.1} parent=1 // pred_fallthru
      _
    %v29 = vld [vmem:[#allocation2] sm:$0xff]
    %v30 = vld [vmem:[#allocation2 + $0x8] sm:$0xff]
    %vm31 = vcmask 261120
    %v32 = vsel %vm31, %v29, 0.0
    %33 = vadd.xlane.f32.xlu0 %v32
    %v34 = vpop.xlane.xlu0 %33
    %v35 = vsel %vm31, %v30, 0.0
    %36 = vadd.xlane.f32.xlu0 %v35
    %v37 = vpop.xlane.xlu0 %36
    %v38 = vrcp.pop 32.0
    %v39 = vmul.f32 %v34, %v38
    %v40 = vmul.f32 %v37, %v38
    %v41 = vsub.f32 %v29, %v39
    %v42 = vsub.f32 %v30, %v40
    %v43 = vmul.f32 %v41, %v41
    %v44 = vmul.f32 %v42, %v42
    %v45 = vsel %vm31, %v43, 0.0
    %46 = vadd.xlane.f32.xlu0 %v45
    %v47 = vpop.xlane.xlu0 %46
    %v48 = vsel %vm31, %v44, 0.0
    %49 = vadd.xlane.f32.xlu0 %v48
    %v50 = vpop.xlane.xlu0 %49
    %v51 = vmul.f32 %v47, %v38
    %v52 = vmul.f32 %v50, %v38
    %v53 = vadd.f32 %v51, 1e-05
    %v54 = vadd.f32 %v52, 1e-05
    %v55 = vrsqrt.pop %v53
    %v56 = vrsqrt.pop %v54
    %v57 = vmul.f32 %v41, %v55
    %v58 = vmul.f32 %v42, %v56
    %v59 = vld [vmem:[%s1] sm:$0x1]
    %v61 = vlaneseq
    %v62 = vshrl.u32 %v61, 7
    %v63 = vsub.s32 0, %v62
    %v64 = vrot.slane %v59, %v63
    %v66 = vmul.f32 %v57, %v64
    %v67 = vmul.f32 %v58, %v64
    %v68 = vld [vmem:[%s2] sm:$0x1]
    %v70 = vlaneseq
    %v71 = vshrl.u32 %v70, 7
    %v72 = vsub.s32 0, %v71
    %v73 = vrot.slane %v68, %v72
    %v75 = vadd.f32 %v66, %v73
    %v76 = vadd.f32 %v67, %v73
    %77 = vst.msk [vmem:[#allocation5] sm:$0xff] %vm31, %v75
    %78 = vst.msk [vmem:[#allocation5 + $0x8] sm:$0xff] %vm31, %v76
    // Predicated region
    $region18: #{tpu_custom_call.1} parent=1 // pred_check
      _
    $region19: #{tpu_custom_call.1} parent=1 // pred_check_branch
      %80 = sbr.rel (0) target = $region21
    $region20: #{tpu_custom_call.1} parent=1 // pred_region
      %s82 = ssub.s32 256, 256
      %83 = vsyncadd [#allocation4], %s82
      %s84 = sshll.u32 [#allocation5], 4
      %s85 = int_to_ptr.vmem [resolvable:$true] %s84
      %90 = dma.vmem_to_hbm [thread:$0]  %s85, 256, %s3, [#allocation4], 128, 128, 8
    $region21: #{tpu_custom_call.1} parent=1 // pred_fallthru
      _
    // Predicated region
    $region22: #{tpu_custom_call.1} parent=1 // pred_check
      _
    $region23: #{tpu_custom_call.1} parent=1 // pred_check_branch
      %92 = sbr.rel (0) target = $region25
    $region24: #{tpu_custom_call.1} parent=1 // pred_region
      %93 = dma.done [#allocation4], 256
    $region25: #{tpu_custom_call.1} parent=1 // pred_fallthru
      _
    %94 = vsyncpa [#allocation3], 1
    %95 = vsyncpa [#allocation4], 1

</llo_original>
